<compile_context>
chip_gen: v6e
topology: v6e:2x2x1
jax: 0.10.0
libtpu: 0.0.40
codegen_flags: <defaults>
</compile_context>

<pallas_src>
import functools

import jax
import jax.numpy as jnp
from jax.experimental import pallas as pl
from jax.experimental.pallas import tpu as pltpu


_TM_MAX = 256                 # T (sublane) tile target
_TN_MAX = 512                 # S (lane) tile target: large multiple of 128
_BATCH_FOLD_BYTES = 4 << 20   # per-step working-set target when folding batches


def _round_up(x, m):
    return ((x + m - 1) // m) * m


def _attn_score_general_kernel(ht_ref, hs_ref, w_ref, b_ref, o_ref):
    # ht_ref: (Bt, tm, H), hs_ref: (Bt, tn, H), w_ref: (H, H) [already W^T],
    # b_ref: (1, H), o_ref: (Bt, tm, tn)
    bt, tm, h = ht_ref.shape
    ht2 = ht_ref[...].reshape(bt * tm, h)           # merge leading dims (8-aligned)
    # Affine: x @ W^T + b, f32 MXU accumulation. Cast back to the input dtype so
    # the dominant (tm x tn x H) score matmul runs at native bf16 rate for bf16.
    proj = (jnp.dot(ht2, w_ref[...], preferred_element_type=jnp.float32)
            + b_ref[...]).astype(ht_ref.dtype)
    proj = proj.reshape(bt, tm, h)
    # Contract over the last dim of both operands -> no hs transpose/relayout.
    scores = jnp.einsum("bth,bsh->bts", proj, hs_ref[...],
                        preferred_element_type=jnp.float32)
    o_ref[...] = scores.astype(o_ref.dtype)


def _attn_score_dot_kernel(ht_ref, hs_ref, o_ref):
    scores = jnp.einsum("bth,bsh->bts", ht_ref[...], hs_ref[...],
                        preferred_element_type=jnp.float32)
    o_ref[...] = scores.astype(o_ref.dtype)


@functools.partial(jax.jit, static_argnames=("attn_type",))
def global_attn_score(h_t, h_s, weight=None, bias=None, attn_type="general"):
    """Pallas implementation of GlobalAttnScore.forward.

    h_t: (B, T, H), h_s: (B, S, H)
    weight: (H, H) PyTorch Linear weight (out, in); bias: (H,)
    returns: (B, T, S) scores.
    """
    assert attn_type in ("general", "dot")
    if attn_type == "general":
        assert weight is not None and bias is not None, \
            "'general' attention requires weight and bias"

    B, T, H = h_t.shape
    Bs, S, Hs = h_s.shape
    assert Bs == B and Hs == H

    dtype = h_t.dtype
    itemsize = jnp.dtype(dtype).itemsize

    # ---- tile selection ----------------------------------------------------
    tm = min(_TM_MAX, _round_up(T, 8))      # always a multiple of 8
    T_pad = _round_up(T, tm)
    tn = min(_TN_MAX, _round_up(S, 128))    # always a multiple of 128
    S_pad = _round_up(S, tn)

    # Fold multiple batches into one grid step when the whole (T,S) fits a tile
    # (tiny-shape regime): amortizes fixed per-step overhead, fills the MXU.
    Bt = 1
    if T_pad == tm and S_pad == tn:
        per_b = (tm * H + tn * H + tm * tn) * itemsize
        Bt = max(1, min(B, _BATCH_FOLD_BYTES // max(per_b, 1)))
        while B % Bt:
            Bt -= 1

    # ---- zero-pad T/S up to tile multiples (sliced off afterwards) ---------
    if T_pad != T:
        h_t = jnp.pad(h_t, ((0, 0), (0, T_pad - T), (0, 0)))
    if S_pad != S:
        h_s = jnp.pad(h_s, ((0, 0), (0, S_pad - S), (0, 0)))

    grid = (B // Bt, T_pad // tm, S_pad // tn)
    ht_spec = pl.BlockSpec((Bt, tm, H), lambda b, i, j: (b, i, 0))
    hs_spec = pl.BlockSpec((Bt, tn, H), lambda b, i, j: (b, j, 0))
    out_spec = pl.BlockSpec((Bt, tm, tn), lambda b, i, j: (b, i, j))
    out_shape = jax.ShapeDtypeStruct((B, T_pad, S_pad), dtype)

    # Raise scoped VMEM above the 16/32 MiB defaults; cap at 64 MiB (v7x).
    block_bytes = (Bt * tm * H + Bt * tn * H + Bt * tm * tn) * itemsize
    const_bytes = (H * H + H) * itemsize if attn_type == "general" else 0
    vmem_limit = int(min(64 << 20,
                         max(32 << 20, 2 * (block_bytes + const_bytes) + (2 << 20))))

    compiler_params = pltpu.CompilerParams(
        dimension_semantics=("parallel", "parallel", "parallel"),
        vmem_limit_bytes=vmem_limit,
    )

    if attn_type == "general":
        # TODO(synk): for very large H (>= ~2048 f32) the resident (H,H) weight
        # should be K-tiled over an extra 'arbitrary' grid axis with a VMEM f32
        # accumulator (v7x has only 64 MiB VMEM per TensorCore).
        w_t = weight.T.astype(dtype)                 # nn.Linear: y = x @ W^T + b
        b2d = bias.reshape(1, H).astype(dtype)
        w_spec = pl.BlockSpec((H, H), lambda b, i, j: (0, 0))
        b_spec = pl.BlockSpec((1, H), lambda b, i, j: (0, 0))
        out = pl.pallas_call(
            _attn_score_general_kernel,
            out_shape=out_shape,
            grid_spec=pltpu.PrefetchScalarGridSpec(
                num_scalar_prefetch=0,
                grid=grid,
                in_specs=[ht_spec, hs_spec, w_spec, b_spec],
                out_specs=out_spec,
            ),
            compiler_params=compiler_params,
        )(h_t, h_s, w_t, b2d)
    else:
        out = pl.pallas_call(
            _attn_score_dot_kernel,
            out_shape=out_shape,
            grid_spec=pltpu.PrefetchScalarGridSpec(
                num_scalar_prefetch=0,
                grid=grid,
                in_specs=[ht_spec, hs_spec],
                out_specs=out_spec,
            ),
            compiler_params=compiler_params,
        )(h_t, h_s)

    if T_pad != T or S_pad != S:
        out = out[:, :T, :S]
    return out


def _reference(h_t, h_s, weight=None, bias=None, attn_type="general"):
    if attn_type == "general":
        h_t = jnp.einsum("bth,kh->btk", h_t, weight, precision="highest") + bias
    return jnp.einsum("bth,bsh->bts", h_t, h_s, precision="highest")


if __name__ == "__main__":
    # Small, deterministic shapes consistent with the module:
    # batch=2, tgt_length=8, src_length=8, hidden_size=32.
    B, T, S, H = 2, 8, 8, 32
    key = jax.random.PRNGKey(0)
    k1, k2, k3, k4 = jax.random.split(key, 4)

    h_t = jax.random.normal(k1, (B, T, H), dtype=jnp.float32)
    h_s = jax.random.normal(k2, (B, S, H), dtype=jnp.float32)

    bound = 1.0 / jnp.sqrt(H)
    weight = jax.random.uniform(k3, (H, H), jnp.float32, -bound, bound)
    bias = jax.random.uniform(k4, (H,), jnp.float32, -bound, bound)

    # 'general' variant (module default).
    out = jax.block_until_ready(
        global_attn_score(h_t, h_s, weight, bias, attn_type="general"))
    assert out.shape == (B, T, S), out.shape
    ref = _reference(h_t, h_s, weight, bias, attn_type="general")
    assert jnp.allclose(out, ref, atol=2e-3, rtol=2e-3)

    # 'dot' variant.
    out_dot = jax.block_until_ready(global_attn_score(h_t, h_s, attn_type="dot"))
    ref_dot = _reference(h_t, h_s, attn_type="dot")
    assert jnp.allclose(out_dot, ref_dot, atol=2e-3, rtol=2e-3)

    # Exercise the tiled / padded multi-block path (uneven T and S, Bt = 1).
    Bm, Tm, Sm, Hm = 2, 520, 700, 128
    k5, k6, k7, k8 = jax.random.split(jax.random.PRNGKey(1), 4)
    h_t_m = jax.random.normal(k5, (Bm, Tm, Hm), dtype=jnp.float32)
    h_s_m = jax.random.normal(k6, (Bm, Sm, Hm), dtype=jnp.float32)
    bound_m = 1.0 / jnp.sqrt(Hm)
    w_m = jax.random.uniform(k7, (Hm, Hm), jnp.float32, -bound_m, bound_m)
    b_m = jax.random.uniform(k8, (Hm,), jnp.float32, -bound_m, bound_m)
    out_m = jax.block_until_ready(
        global_attn_score(h_t_m, h_s_m, w_m, b_m, attn_type="general"))
    assert out_m.shape == (Bm, Tm, Sm), out_m.shape
    ref_m = _reference(h_t_m, h_s_m, w_m, b_m, attn_type="general")
    assert jnp.allclose(out_m, ref_m, atol=2e-3, rtol=2e-3)

    print("KERNEL_OK")
</pallas_src>

<mosaic_0001>
module attributes {stable_mosaic.version = 11 : i64} {
  func.func @_attn_score_general_kernel(%arg0: i32, %arg1: i32, %arg2: i32, %arg3: memref<2x8x32xf32, #tpu.memory_space<vmem>>, %arg4: memref<2x128x32xf32, #tpu.memory_space<vmem>>, %arg5: memref<32x32xf32, #tpu.memory_space<vmem>>, %arg6: memref<1x32xf32, #tpu.memory_space<vmem>>, %arg7: memref<2x8x128xf32, #tpu.memory_space<vmem>>) attributes {dimension_semantics = [#tpu.dimension_semantics<parallel>, #tpu.dimension_semantics<parallel>, #tpu.dimension_semantics<parallel>], iteration_bounds = array<i64: 1, 1, 1>, scalar_prefetch = 0 : i64, scratch_operands = 0 : i64, tpu.core_type = #tpu.core_type<tc>, window_params = [{transform_indices = @transform_0, window_bounds = array<i64: 2, 8, 32>}, {transform_indices = @transform_1, window_bounds = array<i64: 2, 128, 32>}, {pipeline_mode = #tpu.pipeline_mode<synchronous>, transform_indices = @transform_2, window_bounds = array<i64: 32, 32>}, {pipeline_mode = #tpu.pipeline_mode<synchronous>, transform_indices = @transform_3, window_bounds = array<i64: 1, 32>}, {transform_indices = @transform_4, window_bounds = array<i64: 2, 8, 128>}]} {
    %c0 = arith.constant 0 : index
    %c0_0 = arith.constant 0 : index
    %c0_1 = arith.constant 0 : index
    %0 = vector.load %arg3[%c0, %c0_0, %c0_1] : memref<2x8x32xf32, #tpu.memory_space<vmem>>, vector<2x8x32xf32>
    %1 = vector.shape_cast %0 : vector<2x8x32xf32> to vector<16x32xf32>
    %c0_2 = arith.constant 0 : index
    %c0_3 = arith.constant 0 : index
    %2 = vector.load %arg5[%c0_2, %c0_3] : memref<32x32xf32, #tpu.memory_space<vmem>>, vector<32x32xf32>
    %cst = arith.constant dense<0.000000e+00> : vector<16x32xf32>
    %3 = tpu.matmul %1, %2, %cst {dimension_numbers = #tpu.dot_dimension_numbers<[1], [0], [0], [1], [0, 0, 1, 1], [], []>} : vector<16x32xf32>, vector<32x32xf32>, vector<16x32xf32> -> vector<16x32xf32>
    %c0_4 = arith.constant 0 : index
    %c0_5 = arith.constant 0 : index
    %4 = vector.load %arg6[%c0_4, %c0_5] : memref<1x32xf32, #tpu.memory_space<vmem>>, vector<1x32xf32>
    %5 = vector.broadcast %4 : vector<1x32xf32> to vector<16x32xf32>
    %6 = arith.addf %3, %5 : vector<16x32xf32>
    %7 = vector.shape_cast %6 : vector<16x32xf32> to vector<2x8x32xf32>
    %c0_6 = arith.constant 0 : index
    %c0_7 = arith.constant 0 : index
    %c0_8 = arith.constant 0 : index
    %8 = vector.load %arg4[%c0_6, %c0_7, %c0_8] : memref<2x128x32xf32, #tpu.memory_space<vmem>>, vector<2x128x32xf32>
    "tpu.trace_start"() <{level = 10 : i32, message = "bth,bsh->bts"}> : () -> ()
    %cst_9 = arith.constant dense<0.000000e+00> : vector<2x8x128xf32>
    %9 = tpu.matmul %7, %8, %cst_9 {dimension_numbers = #tpu.dot_dimension_numbers<[2], [2], [1], [1], [0, 0, 0, 1, 1, 1], [0], [0]>} : vector<2x8x32xf32>, vector<2x128x32xf32>, vector<2x8x128xf32> -> vector<2x8x128xf32>
    "tpu.trace_stop"() : () -> ()
    %c0_10 = arith.constant 0 : index
    %c0_11 = arith.constant 0 : index
    %c0_12 = arith.constant 0 : index
    %10 = vector.load %arg7[%c0_10, %c0_11, %c0_12] : memref<2x8x128xf32, #tpu.memory_space<vmem>>, vector<2x8x128xf32>
    tpu.vector_store %arg7[%c0_10, %c0_11, %c0_12], %9 {strides = array<i32>} : memref<2x8x128xf32, #tpu.memory_space<vmem>>, vector<2x8x128xf32>,
    return
  }
  func.func @transform_0(%arg0: i32, %arg1: i32, %arg2: i32) -> (i32, i32, i32) {
    %c0_i32 = arith.constant 0 : i32
    %c0_i32_0 = arith.constant 0 : i32
    return %arg0, %arg1, %c0_i32 : i32, i32, i32
  }
  func.func @transform_1(%arg0: i32, %arg1: i32, %arg2: i32) -> (i32, i32, i32) {
    %c0_i32 = arith.constant 0 : i32
    %c0_i32_0 = arith.constant 0 : i32
    return %arg0, %arg2, %c0_i32 : i32, i32, i32
  }
  func.func @transform_2(%arg0: i32, %arg1: i32, %arg2: i32) -> (i32, i32) {
    %c0_i32 = arith.constant 0 : i32
    %c0_i32_0 = arith.constant 0 : i32
    %c0_i32_1 = arith.constant 0 : i32
    return %c0_i32, %c0_i32_0 : i32, i32
  }
  func.func @transform_3(%arg0: i32, %arg1: i32, %arg2: i32) -> (i32, i32) {
    %c0_i32 = arith.constant 0 : i32
    %c0_i32_0 = arith.constant 0 : i32
    %c0_i32_1 = arith.constant 0 : i32
    return %c0_i32, %c0_i32_0 : i32, i32
  }
  func.func @transform_4(%arg0: i32, %arg1: i32, %arg2: i32) -> (i32, i32, i32) {
    %c0_i32 = arith.constant 0 : i32
    return %arg0, %arg1, %arg2 : i32, i32, i32
  }
}

</mosaic_0001>

<llo_original>
// kernel: global_attn_score.1
$region0: #{global_attn_score.1}
  #allocation0 [shape = 'u32[]', space=smem, size = 0x4, offset = 0x4, fixed_abs, tag = 'smem constant byte address 0x4 - core index']
  #allocation1 [shape = 'u32[144,128]{1,0:T(1,128)}', space=vmem, size = 0x12000, scoped, tag = 'internal scratch']
  %s0 = inlined_call_operand.vmem [shape: f32[2,8,32], index: 0, kind: input, shape index: {}]
  %s1 = inlined_call_operand.vmem [shape: f32[2,128,32], index: 1, kind: input, shape index: {}]
  %s2 = inlined_call_operand.vmem [shape: f32[32,32], index: 2, kind: input, shape index: {}]
  %s3 = inlined_call_operand.vmem [shape: f32[1,32], index: 3, kind: input, shape index: {}]
  %s4 = inlined_call_operand.hbm [shape: f32[2,8,128], index: 4, kind: output, shape index: {}]
  %s5 = sld [smem:[#allocation0]]
  $region26: #{global_attn_score.1} parent=0
    _
  %s7 = ssub.s32 1, %s5
  %s8 = scalar_select 0, %s7, %s5
  $region1: #{global_attn_score.1} parent=0
    #allocation2 [shape = 'u8[8192]{0}', space=vmem, size = 0x2000, scoped, tag = 'output window, operand 0, single buffered']
    #allocation3 [shape = 's32[1]{0}', space=sflag, size = 0x4, scoped, tag = 'scoped memory for global_attn_score.1']
    %9 = vsyncpa [#allocation3], 0
    // Predicated region
    $region2: #{global_attn_score.1} parent=1 // pred_check
      _
    $region3: #{global_attn_score.1} parent=1 // pred_check_branch
      %11 = sbr.rel (0) target = $region5
    $region4: #{global_attn_score.1} parent=1 // pred_region
      _
    $region5: #{global_attn_score.1} parent=1 // pred_fallthru
      _
    // Predicated region
    $region6: #{global_attn_score.1} parent=1 // pred_check
      _
    $region7: #{global_attn_score.1} parent=1 // pred_check_branch
      %13 = sbr.rel (0) target = $region9
    $region8: #{global_attn_score.1} parent=1 // pred_region
      _
    $region9: #{global_attn_score.1} parent=1 // pred_fallthru
      _
    // Predicated region
    $region10: #{global_attn_score.1} parent=1 // pred_check
      _
    $region11: #{global_attn_score.1} parent=1 // pred_check_branch
      %15 = sbr.rel (0) target = $region13
    $region12: #{global_attn_score.1} parent=1 // pred_region
      _
    $region13: #{global_attn_score.1} parent=1 // pred_fallthru
      _
    // Predicated region
    $region14: #{global_attn_score.1} parent=1 // pred_check
      _
    $region15: #{global_attn_score.1} parent=1 // pred_check_branch
      %17 = sbr.rel (0) target = $region17
    $region16: #{global_attn_score.1} parent=1 // pred_region
      _
    $region17: #{global_attn_score.1} parent=1 // pred_fallthru
      _
    %v18 = vld [vmem:[%s0] sm:$0xff]
    %v19 = vld [vmem:[%s0 + $0x8] sm:$0xff]
    %v20 = vld [vmem:[%s2] sm:$0xff]
    %v21 = vld [vmem:[%s2 + $0x8] sm:$0xff]
    %v22 = vld [vmem:[%s2 + $0x10] sm:$0xff]
    %v23 = vld [vmem:[%s2 + $0x18] sm:$0xff]
    %v24 = vld [vmem:[%s3] sm:$0x1]
    %v26 = vlaneseq
    %v27 = vshrl.u32 %v26, 7
    %v28 = vsub.s32 0, %v27
    %v29 = vrot.slane %v24, %v28
    %vm31 = vcmask 261120
    %v33 = vsel %vm31, %v18, 0
    %v36 = vsel %vm31, %v19, 0
    %38 = vmatprep.subr.mxu0 0.0
    %39 = vmatpush1.msra.mxu0 0.0
    %40 = vmatprep.subr.mxu0 0.0
    %41 = vmatpush1.msra.mxu0 0.0
    %42 = vmatprep.subr.mxu0 0.0
    %43 = vmatpush1.msra.mxu0 0.0
    %44 = vmatprep.subr.mxu0 0.0
    %45 = vmatpush1.msra.mxu0 0.0
    %46 = vmatprep.subr.mxu0 0.0
    %47 = vmatpush1.msra.mxu0 0.0
    %48 = vmatprep.subr.mxu0 0.0
    %49 = vmatpush1.msra.mxu0 0.0
    %50 = vmatprep.subr.mxu0 0.0
    %51 = vmatpush1.msra.mxu0 0.0
    %52 = vmatprep.subr.mxu0 0.0
    %53 = vmatpush1.msra.mxu0 0.0
    %54 = vmatprep.subr.mxu0 0.0
    %55 = vmatpush1.msra.mxu0 0.0
    %56 = vmatprep.subr.mxu0 0.0
    %57 = vmatpush1.msra.mxu0 0.0
    %58 = vmatprep.subr.mxu0 0.0
    %59 = vmatpush1.msra.mxu0 0.0
    %60 = vmatprep.subr.mxu0 0.0
    %61 = vmatpush1.msra.mxu0 0.0
    %62 = vmatprep.subr.mxu0 0.0
    %63 = vmatpush1.msra.mxu0 %v23
    %64 = vmatprep.subr.mxu0 0.0
    %65 = vmatpush1.msra.mxu0 %v22
    %66 = vmatprep.subr.mxu0 0.0
    %67 = vmatpush1.msra.mxu0 %v21
    %68 = vmatprep.subr.mxu0 0.0
    %69 = vmatpush1.msra.mxu0 %v20
    %70 = vmatprep.subr.mxu0 0.0
    %71 = vmatpush2.msra.mxu0 0.0
    %72 = vmatprep.subr.mxu0 0.0
    %73 = vmatpush2.msra.mxu0 0.0
    %74 = vmatprep.subr.mxu0 0.0
    %75 = vmatpush2.msra.mxu0 0.0
    %76 = vmatprep.subr.mxu0 0.0
    %77 = vmatpush2.msra.mxu0 0.0
    %78 = vmatprep.subr.mxu0 0.0
    %79 = vmatpush2.msra.mxu0 0.0
    %80 = vmatprep.subr.mxu0 0.0
    %81 = vmatpush2.msra.mxu0 0.0
    %82 = vmatprep.subr.mxu0 0.0
    %83 = vmatpush2.msra.mxu0 0.0
    %84 = vmatprep.subr.mxu0 0.0
    %85 = vmatpush2.msra.mxu0 0.0
    %86 = vmatprep.subr.mxu0 0.0
    %87 = vmatpush2.msra.mxu0 0.0
    %88 = vmatprep.subr.mxu0 0.0
    %89 = vmatpush2.msra.mxu0 0.0
    %90 = vmatprep.subr.mxu0 0.0
    %91 = vmatpush2.msra.mxu0 0.0
    %92 = vmatprep.subr.mxu0 0.0
    %93 = vmatpush2.msra.mxu0 0.0
    %94 = vmatprep.subr.mxu0 0.0
    %95 = vmatpush2.msra.mxu0 0.0
    %96 = vmatprep.subr.mxu0 0.0
    %97 = vmatpush2.msra.mxu0 0.0
    %98 = vmatprep.subr.mxu0 0.0
    %99 = vmatpush2.msra.mxu0 0.0
    %100 = vmatprep.subr.mxu0 0.0
    %101 = vmatpush2.msra.mxu0 0.0
    %102 = vmatprep.mubr.f32.mxu0 0.0
    %103 = vmatmul.mubr.f32.gmra.mxu0 %v33
    %v104 = vpop.f32.mrf.mxu0
    %v105 = vadd.f32 %v29, %v104
    %v106 = vpop.f32.mrf.mxu0
    %107 = vmatprep.mubr.f32.mxu0 0.0
    %108 = vmatmul.mubr.f32.gmra.mxu0 %v36
    %v109 = vpop.f32.mrf.mxu0
    %v110 = vadd.f32 %v29, %v109
    %v111 = vpop.f32.mrf.mxu0
    %112 = vdwg.mxu0
    %v113 = vld [vmem:[%s1] sm:$0xff]
    %v114 = vld [vmem:[%s1 + $0x8] sm:$0xff]
    %v115 = vld [vmem:[%s1 + $0x10] sm:$0xff]
    %v116 = vld [vmem:[%s1 + $0x18] sm:$0xff]
    %v117 = vld [vmem:[%s1 + $0x20] sm:$0xff]
    %v118 = vld [vmem:[%s1 + $0x28] sm:$0xff]
    %v119 = vld [vmem:[%s1 + $0x30] sm:$0xff]
    %v120 = vld [vmem:[%s1 + $0x38] sm:$0xff]
    %v121 = vld [vmem:[%s1 + $0x40] sm:$0xff]
    %v122 = vld [vmem:[%s1 + $0x48] sm:$0xff]
    %v123 = vld [vmem:[%s1 + $0x50] sm:$0xff]
    %v124 = vld [vmem:[%s1 + $0x58] sm:$0xff]
    %v125 = vld [vmem:[%s1 + $0x60] sm:$0xff]
    %v126 = vld [vmem:[%s1 + $0x68] sm:$0xff]
    %v127 = vld [vmem:[%s1 + $0x70] sm:$0xff]
    %v128 = vld [vmem:[%s1 + $0x78] sm:$0xff]
    %v129 = vld [vmem:[%s1 + $0x80] sm:$0xff]
    %v130 = vld [vmem:[%s1 + $0x88] sm:$0xff]
    %v131 = vld [vmem:[%s1 + $0x90] sm:$0xff]
    %v132 = vld [vmem:[%s1 + $0x98] sm:$0xff]
    %v133 = vld [vmem:[%s1 + $0xa0] sm:$0xff]
    %v134 = vld [vmem:[%s1 + $0xa8] sm:$0xff]
    %v135 = vld [vmem:[%s1 + $0xb0] sm:$0xff]
    %v136 = vld [vmem:[%s1 + $0xb8] sm:$0xff]
    %v137 = vld [vmem:[%s1 + $0xc0] sm:$0xff]
    %v138 = vld [vmem:[%s1 + $0xc8] sm:$0xff]
    %v139 = vld [vmem:[%s1 + $0xd0] sm:$0xff]
    %v140 = vld [vmem:[%s1 + $0xd8] sm:$0xff]
    %v141 = vld [vmem:[%s1 + $0xe0] sm:$0xff]
    %v142 = vld [vmem:[%s1 + $0xe8] sm:$0xff]
    %v143 = vld [vmem:[%s1 + $0xf0] sm:$0xff]
    %v144 = vld [vmem:[%s1 + $0xf8] sm:$0xff]
    %v146 = vsel %vm31, %v105, 0
    %v149 = vsel %vm31, %v113, 0
    %v152 = vsel %vm31, %v114, 0
    %v155 = vsel %vm31, %v115, 0
    %v158 = vsel %vm31, %v116, 0
    %v161 = vsel %vm31, %v117, 0
    %v164 = vsel %vm31, %v118, 0
    %v167 = vsel %vm31, %v119, 0
    %v170 = vsel %vm31, %v120, 0
    %v173 = vsel %vm31, %v121, 0
    %v176 = vsel %vm31, %v122, 0
    %v179 = vsel %vm31, %v123, 0
    %v182 = vsel %vm31, %v124, 0
    %v185 = vsel %vm31, %v125, 0
    %v188 = vsel %vm31, %v126, 0
    %v191 = vsel %vm31, %v127, 0
    %v194 = vsel %vm31, %v128, 0
    %196 = vmatprep.subr.mxu0 0.0
    %197 = vmatpush1.xpose.msra.mxu0 %v194
    %198 = vmatprep.subr.mxu0 0.0
    %199 = vmatpush1.xpose.msra.mxu0 %v191
    %200 = vmatprep.subr.mxu0 0.0
    %201 = vmatpush1.xpose.msra.mxu0 %v188
    %202 = vmatprep.subr.mxu0 0.0
    %203 = vmatpush1.xpose.msra.mxu0 %v185
    %204 = vmatprep.subr.mxu0 0.0
    %205 = vmatpush1.xpose.msra.mxu0 %v182
    %206 = vmatprep.subr.mxu0 0.0
    %207 = vmatpush1.xpose.msra.mxu0 %v179
    %208 = vmatprep.subr.mxu0 0.0
    %209 = vmatpush1.xpose.msra.mxu0 %v176
    %210 = vmatprep.subr.mxu0 0.0
    %211 = vmatpush1.xpose.msra.mxu0 %v173
    %212 = vmatprep.subr.mxu0 0.0
    %213 = vmatpush1.xpose.msra.mxu0 %v170
    %214 = vmatprep.subr.mxu0 0.0
    %215 = vmatpush1.xpose.msra.mxu0 %v167
    %216 = vmatprep.subr.mxu0 0.0
    %217 = vmatpush1.xpose.msra.mxu0 %v164
    %218 = vmatprep.subr.mxu0 0.0
    %219 = vmatpush1.xpose.msra.mxu0 %v161
    %220 = vmatprep.subr.mxu0 0.0
    %221 = vmatpush1.xpose.msra.mxu0 %v158
    %222 = vmatprep.subr.mxu0 0.0
    %223 = vmatpush1.xpose.msra.mxu0 %v155
    %224 = vmatprep.subr.mxu0 0.0
    %225 = vmatpush1.xpose.msra.mxu0 %v152
    %226 = vmatprep.subr.mxu0 0.0
    %227 = vmatpush1.xpose.msra.mxu0 %v149
    %228 = vmatprep.subr.mxu0 0.0
    %229 = vmatpush2.xpose.msra.mxu0 0.0
    %230 = vmatprep.subr.mxu0 0.0
    %231 = vmatpush2.xpose.msra.mxu0 0.0
    %232 = vmatprep.subr.mxu0 0.0
    %233 = vmatpush2.xpose.msra.mxu0 0.0
    %234 = vmatprep.subr.mxu0 0.0
    %235 = vmatpush2.xpose.msra.mxu0 0.0
    %236 = vmatprep.subr.mxu0 0.0
    %237 = vmatpush2.xpose.msra.mxu0 0.0
    %238 = vmatprep.subr.mxu0 0.0
    %239 = vmatpush2.xpose.msra.mxu0 0.0
    %240 = vmatprep.subr.mxu0 0.0
    %241 = vmatpush2.xpose.msra.mxu0 0.0
    %242 = vmatprep.subr.mxu0 0.0
    %243 = vmatpush2.xpose.msra.mxu0 0.0
    %244 = vmatprep.subr.mxu0 0.0
    %245 = vmatpush2.xpose.msra.mxu0 0.0
    %246 = vmatprep.subr.mxu0 0.0
    %247 = vmatpush2.xpose.msra.mxu0 0.0
    %248 = vmatprep.subr.mxu0 0.0
    %249 = vmatpush2.xpose.msra.mxu0 0.0
    %250 = vmatprep.subr.mxu0 0.0
    %251 = vmatpush2.xpose.msra.mxu0 0.0
    %252 = vmatprep.subr.mxu0 0.0
    %253 = vmatpush2.xpose.msra.mxu0 0.0
    %254 = vmatprep.subr.mxu0 0.0
    %255 = vmatpush2.xpose.msra.mxu0 0.0
    %256 = vmatprep.subr.mxu0 0.0
    %257 = vmatpush2.xpose.msra.mxu0 0.0
    %258 = vmatprep.subr.mxu0 0.0
    %259 = vmatpush2.xpose.msra.mxu0 0.0
    %260 = vmatprep.mubr.f32.mxu0 0.0
    %261 = vmatmul.mubr.f32.gmra.mxu0 %v146
    %v262 = vpop.f32.mrf.mxu0
    %v263 = vadd.f32 0.0, %v262
    %v264 = vpop.f32.mrf.mxu0
    %265 = vdwg.mxu0
    %v267 = vsel %vm31, %v110, 0
    %v270 = vsel %vm31, %v129, 0
    %v273 = vsel %vm31, %v130, 0
    %v276 = vsel %vm31, %v131, 0
    %v279 = vsel %vm31, %v132, 0
    %v282 = vsel %vm31, %v133, 0
    %v285 = vsel %vm31, %v134, 0
    %v288 = vsel %vm31, %v135, 0
    %v291 = vsel %vm31, %v136, 0
    %v294 = vsel %vm31, %v137, 0
    %v297 = vsel %vm31, %v138, 0
    %v300 = vsel %vm31, %v139, 0
    %v303 = vsel %vm31, %v140, 0
    %v306 = vsel %vm31, %v141, 0
    %v309 = vsel %vm31, %v142, 0
    %v312 = vsel %vm31, %v143, 0
    %v315 = vsel %vm31, %v144, 0
    %317 = vmatprep.subr.mxu0 0.0
    %318 = vmatpush1.xpose.msra.mxu0 %v315
    %319 = vmatprep.subr.mxu0 0.0
    %320 = vmatpush1.xpose.msra.mxu0 %v312
    %321 = vmatprep.subr.mxu0 0.0
    %322 = vmatpush1.xpose.msra.mxu0 %v309
    %323 = vmatprep.subr.mxu0 0.0
    %324 = vmatpush1.xpose.msra.mxu0 %v306
    %325 = vmatprep.subr.mxu0 0.0
    %326 = vmatpush1.xpose.msra.mxu0 %v303
    %327 = vmatprep.subr.mxu0 0.0
    %328 = vmatpush1.xpose.msra.mxu0 %v300
    %329 = vmatprep.subr.mxu0 0.0
    %330 = vmatpush1.xpose.msra.mxu0 %v297
    %331 = vmatprep.subr.mxu0 0.0
    %332 = vmatpush1.xpose.msra.mxu0 %v294
    %333 = vmatprep.subr.mxu0 0.0
    %334 = vmatpush1.xpose.msra.mxu0 %v291
    %335 = vmatprep.subr.mxu0 0.0
    %336 = vmatpush1.xpose.msra.mxu0 %v288
    %337 = vmatprep.subr.mxu0 0.0
    %338 = vmatpush1.xpose.msra.mxu0 %v285
    %339 = vmatprep.subr.mxu0 0.0
    %340 = vmatpush1.xpose.msra.mxu0 %v282
    %341 = vmatprep.subr.mxu0 0.0
    %342 = vmatpush1.xpose.msra.mxu0 %v279
    %343 = vmatprep.subr.mxu0 0.0
    %344 = vmatpush1.xpose.msra.mxu0 %v276
    %345 = vmatprep.subr.mxu0 0.0
    %346 = vmatpush1.xpose.msra.mxu0 %v273
    %347 = vmatprep.subr.mxu0 0.0
    %348 = vmatpush1.xpose.msra.mxu0 %v270
    %349 = vmatprep.subr.mxu0 0.0
    %350 = vmatpush2.xpose.msra.mxu0 0.0
    %351 = vmatprep.subr.mxu0 0.0
    %352 = vmatpush2.xpose.msra.mxu0 0.0
    %353 = vmatprep.subr.mxu0 0.0
    %354 = vmatpush2.xpose.msra.mxu0 0.0
    %355 = vmatprep.subr.mxu0 0.0
    %356 = vmatpush2.xpose.msra.mxu0 0.0
    %357 = vmatprep.subr.mxu0 0.0
    %358 = vmatpush2.xpose.msra.mxu0 0.0
    %359 = vmatprep.subr.mxu0 0.0
    %360 = vmatpush2.xpose.msra.mxu0 0.0
    %361 = vmatprep.subr.mxu0 0.0
    %362 = vmatpush2.xpose.msra.mxu0 0.0
    %363 = vmatprep.subr.mxu0 0.0
    %364 = vmatpush2.xpose.msra.mxu0 0.0
    %365 = vmatprep.subr.mxu0 0.0
    %366 = vmatpush2.xpose.msra.mxu0 0.0
    %367 = vmatprep.subr.mxu0 0.0
    %368 = vmatpush2.xpose.msra.mxu0 0.0
    %369 = vmatprep.subr.mxu0 0.0
    %370 = vmatpush2.xpose.msra.mxu0 0.0
    %371 = vmatprep.subr.mxu0 0.0
    %372 = vmatpush2.xpose.msra.mxu0 0.0
    %373 = vmatprep.subr.mxu0 0.0
    %374 = vmatpush2.xpose.msra.mxu0 0.0
    %375 = vmatprep.subr.mxu0 0.0
    %376 = vmatpush2.xpose.msra.mxu0 0.0
    %377 = vmatprep.subr.mxu0 0.0
    %378 = vmatpush2.xpose.msra.mxu0 0.0
    %379 = vmatprep.subr.mxu0 0.0
    %380 = vmatpush2.xpose.msra.mxu0 0.0
    %381 = vmatprep.mubr.f32.mxu0 0.0
    %382 = vmatmul.mubr.f32.gmra.mxu0 %v267
    %v383 = vpop.f32.mrf.mxu0
    %v384 = vadd.f32 0.0, %v383
    %v385 = vpop.f32.mrf.mxu0
    %386 = vdwg.mxu0
    %387 = vst [vmem:[#allocation2] sm:$0xff] %v263
    %388 = vst [vmem:[#allocation2 + $0x8] sm:$0xff] %v384
    // Predicated region
    $region18: #{global_attn_score.1} parent=1 // pred_check
      _
    $region19: #{global_attn_score.1} parent=1 // pred_check_branch
      %390 = sbr.rel (0) target = $region21
    $region20: #{global_attn_score.1} parent=1 // pred_region
      %s392 = ssub.s32 256, 256
      %393 = vsyncadd [#allocation3], %s392
      %s394 = sshll.u32 [#allocation2], 4
      %s395 = int_to_ptr.vmem [resolvable:$true] %s394
      %400 = dma.vmem_to_hbm [thread:$0]  %s395, 256, %s4, [#allocation3], 128, 128, 8
    $region21: #{global_attn_score.1} parent=1 // pred_fallthru
      _
    // Predicated region
    $region22: #{global_attn_score.1} parent=1 // pred_check
      _
    $region23: #{global_attn_score.1} parent=1 // pred_check_branch
      %402 = sbr.rel (0) target = $region25
    $region24: #{global_attn_score.1} parent=1 // pred_region
      %403 = dma.done [#allocation3], 256
    $region25: #{global_attn_score.1} parent=1 // pred_fallthru
      _
    %404 = vsyncpa [#allocation3], 1

</llo_original>
